<compile_context>
chip_gen: v6e
topology: v6e:2x2x1
jax: 0.10.0
libtpu: 0.0.40
codegen_flags: <defaults>
</compile_context>

<pallas_src>
import functools

import jax
import jax.numpy as jnp
from jax.experimental import pallas as pl
from jax.experimental.pallas import tpu as pltpu

_LANES = 128     # lane width (last-dim granularity)
_SUBLANES = 8    # f32 sublane granularity (second-to-last dim)


def _round_up(x: int, m: int) -> int:
    return (x + m - 1) // m * m


def _cdiv(a: int, b: int) -> int:
    return (a + b - 1) // b


def linear_ge_kernel(x_ref, w1_ref, b1_ref, w2_ref, b2_ref, o_ref):
    # First linear on the MXU: [tn, Cin_p] @ [Cin_p, H_p] (bf16 x bf16, f32 acc).
    x = x_ref[...].astype(w1_ref.dtype)
    h = jnp.dot(x, w1_ref[...], preferred_element_type=jnp.float32)
    # Bias + ReLU in f32 on the VPU (zero-padded H columns stay exactly zero).
    h = jnp.maximum(h + b1_ref[...], 0.0)
    # Second linear on the MXU: [tn, H_p] @ [H_p, Cout_p] (bf16 x bf16, f32 acc).
    out = jnp.dot(h.astype(w2_ref.dtype), w2_ref[...],
                  preferred_element_type=jnp.float32)
    out = out + b2_ref[...]
    # Lane-dense store: Cout is padded to a multiple of 128 by the wrapper.
    o_ref[...] = out.astype(o_ref.dtype)


@functools.partial(
    jax.jit,
    static_argnames=("row_tile", "matmul_dtype", "vmem_budget_bytes"))
def linear_ge_forward(x, w1_t, b1, w2_t, b2, edge_index=None, *,
                      row_tile=None, matmul_dtype=jnp.bfloat16,
                      vmem_budget_bytes=24 * 1024 * 1024):
    """Fused Linear -> ReLU -> Linear.

    x:    [N, Cin]          (output keeps x.dtype)
    w1_t: [Cin, H]   b1: [1, H]        (weights stored pre-transposed)
    w2_t: [H, Cout]  b2: [1, Cout]
    edge_index: accepted for PyTorch signature parity, unused by the forward.
    """
    del edge_index  # unused, exactly like the PyTorch module.

    n, cin = x.shape
    hidden = w1_t.shape[1]
    cout = w2_t.shape[1]
    out_dtype = x.dtype
    mm_dtype = jnp.dtype(matmul_dtype)

    # ---- Pad feature dims to lane multiples (zero padding is exact). --------
    cin_p = _round_up(cin, _LANES)
    hid_p = _round_up(hidden, _LANES)
    cout_p = _round_up(cout, _LANES)

    # NOTE: in a real model, pad/cast the weights once at init, not per call.
    w1p = jnp.pad(w1_t.astype(mm_dtype), ((0, cin_p - cin), (0, hid_p - hidden)))
    b1p = jnp.pad(b1.astype(jnp.float32), ((0, 0), (0, hid_p - hidden)))
    w2p = jnp.pad(w2_t.astype(mm_dtype), ((0, hid_p - hidden), (0, cout_p - cout)))
    b2p = jnp.pad(b2.astype(jnp.float32), ((0, 0), (0, cout_p - cout)))

    # ---- Pick the row tile from a VMEM budget. -------------------------------
    x_isz = jnp.dtype(out_dtype).itemsize
    # Per-row VMEM cost: double-buffered x tile + double-buffered out tile +
    # live f32 [*, H]/[*, Cout] intermediates + bf16 cast copies.
    bytes_per_row = (2 * cin_p * x_isz + 2 * cout_p * x_isz
                     + hid_p * (4 + mm_dtype.itemsize) + cout_p * 4
                     + cin_p * mm_dtype.itemsize)
    # Resident weights/biases (double-buffered by the default pipeliner, but
    # only DMA'd once thanks to the constant index_maps).
    weight_bytes = 2 * ((cin_p * hid_p + hid_p * cout_p) * mm_dtype.itemsize
                        + (hid_p + cout_p) * 4)

    if row_tile is None:
        avail = max(vmem_budget_bytes - weight_bytes, _SUBLANES * bytes_per_row)
        tn = max(_SUBLANES,
                 min(512, (avail // bytes_per_row) // _SUBLANES * _SUBLANES))
    else:
        tn = max(_SUBLANES, _round_up(int(row_tile), _SUBLANES))
    # Never tile wider than the (sublane-rounded) row count.
    tn = min(tn, _round_up(n, _SUBLANES))
    # Prefer >= 2 grid steps so the "parallel" axis can shard over both v7x TCs.
    while _cdiv(n, tn) < 2 and tn > _SUBLANES:
        tn = _round_up(_cdiv(tn, 2), _SUBLANES)

    n_p = _round_up(n, tn)
    x_p = jnp.pad(x, ((0, n_p - n), (0, cin_p - cin)))

    grid = (n_p // tn,)

    vmem_needed = weight_bytes + tn * bytes_per_row
    vmem_limit = int(min(100 * 1024 * 1024,
                         max(32 * 1024 * 1024, 2 * vmem_needed)))

    out_padded = pl.pallas_call(
        linear_ge_kernel,
        out_shape=jax.ShapeDtypeStruct((n_p, cout_p), out_dtype),
        grid_spec=pltpu.PrefetchScalarGridSpec(
            num_scalar_prefetch=0,
            grid=grid,
            in_specs=[
                pl.BlockSpec((tn, cin_p), lambda i: (i, 0)),      # x row tile
                pl.BlockSpec((cin_p, hid_p), lambda i: (0, 0)),   # W1^T (resident)
                pl.BlockSpec((1, hid_p), lambda i: (0, 0)),       # b1
                pl.BlockSpec((hid_p, cout_p), lambda i: (0, 0)),  # W2^T (resident)
                pl.BlockSpec((1, cout_p), lambda i: (0, 0)),      # b2
            ],
            out_specs=pl.BlockSpec((tn, cout_p), lambda i: (i, 0)),
        ),
        compiler_params=pltpu.CompilerParams(
            dimension_semantics=("parallel",),
            vmem_limit_bytes=vmem_limit),
    )(x_p, w1p, b1p, w2p, b2p)

    # Strip row / lane padding.
    return out_padded[:n, :cout]


def init_linear_params(key, fan_in, fan_out, dtype=jnp.float32):
    """Deterministic init mimicking torch.nn.Linear: U(-1/sqrt(fan_in), +)."""
    kw, kb = jax.random.split(key)
    bound = 1.0 / jnp.sqrt(jnp.asarray(fan_in, dtype))
    # Stored transposed: [fan_in, fan_out] so the kernel does x @ W directly.
    w_t = jax.random.uniform(kw, (fan_in, fan_out), dtype, -bound, bound)
    b = jax.random.uniform(kb, (1, fan_out), dtype, -bound, bound)
    return w_t, b


if __name__ == "__main__":
    in_channels, hidden_channels, out_channels = 4, 32, 4
    num_nodes = 8

    key = jax.random.PRNGKey(0)
    kx, k1, k2, ke = jax.random.split(key, 4)

    x = jax.random.normal(kx, (num_nodes, in_channels), jnp.float32)
    # edge_index is unused by the forward pass (kept for signature parity).
    edge_index = jax.random.randint(ke, (2, 16), 0, num_nodes, jnp.int32)

    w1_t, b1 = init_linear_params(k1, in_channels, hidden_channels)
    w2_t, b2 = init_linear_params(k2, hidden_channels, out_channels)

    out = linear_ge_forward(x, w1_t, b1, w2_t, b2, edge_index)
    jax.block_until_ready(out)
    assert out.shape == (num_nodes, out_channels)

    # Reference with matching matmul precision (bf16 operands, f32 accumulate).
    bf = jnp.bfloat16
    h_ref = jnp.maximum(
        jnp.dot(x.astype(bf), w1_t.astype(bf),
                preferred_element_type=jnp.float32) + b1, 0.0)
    ref = jnp.dot(h_ref.astype(bf), w2_t.astype(bf),
                  preferred_element_type=jnp.float32) + b2
    assert jnp.allclose(out, ref, atol=1e-2, rtol=1e-2)

    # Sanity check against the full-f32 PyTorch-equivalent reference
    # (bf16-matmul rounding is the only difference; see module docstring).
    ref_f32 = jnp.maximum(x @ w1_t + b1, 0.0) @ w2_t + b2
    assert jnp.allclose(out, ref_f32, atol=5e-2, rtol=5e-2)

    print("KERNEL_OK")
</pallas_src>

<mosaic_0001>
module attributes {stable_mosaic.version = 11 : i64} {
  func.func @linear_ge_kernel(%arg0: i32, %arg1: memref<8x128xf32, #tpu.memory_space<vmem>>, %arg2: memref<128x128xbf16, #tpu.memory_space<vmem>>, %arg3: memref<1x128xf32, #tpu.memory_space<vmem>>, %arg4: memref<128x128xbf16, #tpu.memory_space<vmem>>, %arg5: memref<1x128xf32, #tpu.memory_space<vmem>>, %arg6: memref<8x128xf32, #tpu.memory_space<vmem>>) attributes {dimension_semantics = [#tpu.dimension_semantics<parallel>], iteration_bounds = array<i64: 1>, scalar_prefetch = 0 : i64, scratch_operands = 0 : i64, tpu.core_type = #tpu.core_type<tc>, window_params = [{transform_indices = @transform_0, window_bounds = array<i64: 8, 128>}, {pipeline_mode = #tpu.pipeline_mode<synchronous>, transform_indices = @transform_1, window_bounds = array<i64: 128, 128>}, {pipeline_mode = #tpu.pipeline_mode<synchronous>, transform_indices = @transform_2, window_bounds = array<i64: 1, 128>}, {pipeline_mode = #tpu.pipeline_mode<synchronous>, transform_indices = @transform_3, window_bounds = array<i64: 128, 128>}, {pipeline_mode = #tpu.pipeline_mode<synchronous>, transform_indices = @transform_4, window_bounds = array<i64: 1, 128>}, {transform_indices = @transform_5, window_bounds = array<i64: 8, 128>}]} {
    %c0 = arith.constant 0 : index
    %c0_0 = arith.constant 0 : index
    %0 = vector.load %arg1[%c0, %c0_0] : memref<8x128xf32, #tpu.memory_space<vmem>>, vector<8x128xf32>
    %1 = arith.truncf %0 : vector<8x128xf32> to vector<8x128xbf16>
    %c0_1 = arith.constant 0 : index
    %c0_2 = arith.constant 0 : index
    %2 = vector.load %arg2[%c0_1, %c0_2] : memref<128x128xbf16, #tpu.memory_space<vmem>>, vector<128x128xbf16>
    %cst = arith.constant dense<0.000000e+00> : vector<8x128xf32>
    %3 = tpu.matmul %1, %2, %cst {dimension_numbers = #tpu.dot_dimension_numbers<[1], [0], [0], [1], [0, 0, 1, 1], [], []>} : vector<8x128xbf16>, vector<128x128xbf16>, vector<8x128xf32> -> vector<8x128xf32>
    %c0_3 = arith.constant 0 : index
    %c0_4 = arith.constant 0 : index
    %4 = vector.load %arg3[%c0_3, %c0_4] : memref<1x128xf32, #tpu.memory_space<vmem>>, vector<1x128xf32>
    %5 = vector.broadcast %4 : vector<1x128xf32> to vector<8x128xf32>
    %6 = arith.addf %3, %5 : vector<8x128xf32>
    %cst_5 = arith.constant 0.000000e+00 : f32
    %7 = vector.broadcast %cst_5 : f32 to vector<8x128xf32>
    %8 = arith.maximumf %6, %7 : vector<8x128xf32>
    %9 = arith.truncf %8 : vector<8x128xf32> to vector<8x128xbf16>
    %c0_6 = arith.constant 0 : index
    %c0_7 = arith.constant 0 : index
    %10 = vector.load %arg4[%c0_6, %c0_7] : memref<128x128xbf16, #tpu.memory_space<vmem>>, vector<128x128xbf16>
    %cst_8 = arith.constant dense<0.000000e+00> : vector<8x128xf32>
    %11 = tpu.matmul %9, %10, %cst_8 {dimension_numbers = #tpu.dot_dimension_numbers<[1], [0], [0], [1], [0, 0, 1, 1], [], []>} : vector<8x128xbf16>, vector<128x128xbf16>, vector<8x128xf32> -> vector<8x128xf32>
    %c0_9 = arith.constant 0 : index
    %c0_10 = arith.constant 0 : index
    %12 = vector.load %arg5[%c0_9, %c0_10] : memref<1x128xf32, #tpu.memory_space<vmem>>, vector<1x128xf32>
    %13 = vector.broadcast %12 : vector<1x128xf32> to vector<8x128xf32>
    %14 = arith.addf %11, %13 : vector<8x128xf32>
    %c0_11 = arith.constant 0 : index
    %c0_12 = arith.constant 0 : index
    %15 = vector.load %arg6[%c0_11, %c0_12] : memref<8x128xf32, #tpu.memory_space<vmem>>, vector<8x128xf32>
    tpu.vector_store %arg6[%c0_11, %c0_12], %14 {strides = array<i32>} : memref<8x128xf32, #tpu.memory_space<vmem>>, vector<8x128xf32>,
    return
  }
  func.func @transform_0(%arg0: i32) -> (i32, i32) {
    %c0_i32 = arith.constant 0 : i32
    %c0_i32_0 = arith.constant 0 : i32
    return %arg0, %c0_i32 : i32, i32
  }
  func.func @transform_1(%arg0: i32) -> (i32, i32) {
    %c0_i32 = arith.constant 0 : i32
    %c0_i32_0 = arith.constant 0 : i32
    %c0_i32_1 = arith.constant 0 : i32
    return %c0_i32, %c0_i32_0 : i32, i32
  }
  func.func @transform_2(%arg0: i32) -> (i32, i32) {
    %c0_i32 = arith.constant 0 : i32
    %c0_i32_0 = arith.constant 0 : i32
    %c0_i32_1 = arith.constant 0 : i32
    return %c0_i32, %c0_i32_0 : i32, i32
  }
  func.func @transform_3(%arg0: i32) -> (i32, i32) {
    %c0_i32 = arith.constant 0 : i32
    %c0_i32_0 = arith.constant 0 : i32
    %c0_i32_1 = arith.constant 0 : i32
    return %c0_i32, %c0_i32_0 : i32, i32
  }
  func.func @transform_4(%arg0: i32) -> (i32, i32) {
    %c0_i32 = arith.constant 0 : i32
    %c0_i32_0 = arith.constant 0 : i32
    %c0_i32_1 = arith.constant 0 : i32
    return %c0_i32, %c0_i32_0 : i32, i32
  }
  func.func @transform_5(%arg0: i32) -> (i32, i32) {
    %c0_i32 = arith.constant 0 : i32
    %c0_i32_0 = arith.constant 0 : i32
    return %arg0, %c0_i32 : i32, i32
  }
}

</mosaic_0001>

<llo_original>
// kernel: linear_ge_forward.1
$region0: #{linear_ge_forward.1}
  #allocation0 [shape = 'u32[]', space=smem, size = 0x4, offset = 0x4, fixed_abs, tag = 'smem constant byte address 0x4 - core index']
  #allocation1 [shape = 'u32[144,128]{1,0:T(1,128)}', space=vmem, size = 0x12000, scoped, tag = 'internal scratch']
  %s0 = inlined_call_operand.vmem [shape: f32[8,128], index: 0, kind: input, shape index: {}]
  %s1 = inlined_call_operand.vmem [shape: bf16[128,128], index: 1, kind: input, shape index: {}]
  %s2 = inlined_call_operand.vmem [shape: f32[1,128], index: 2, kind: input, shape index: {}]
  %s3 = inlined_call_operand.vmem [shape: bf16[128,128], index: 3, kind: input, shape index: {}]
  %s4 = inlined_call_operand.vmem [shape: f32[1,128], index: 4, kind: input, shape index: {}]
  %s5 = inlined_call_operand.vmem [shape: f32[8,128], index: 5, kind: output, shape index: {}]
  %s6 = sld [smem:[#allocation0]]
  $region30: #{linear_ge_forward.1} parent=0
    _
  %s8 = ssub.s32 1, %s6
  %s9 = scalar_select 0, %s8, %s6
  // Predicated region
  $region2: #{linear_ge_forward.1} parent=0 // pred_check
    _
  $region3: #{linear_ge_forward.1} parent=0 // pred_check_branch
    %11 = sbr.rel (0) target = $region5
  $region4: #{linear_ge_forward.1} parent=0 // pred_region
    _
  $region5: #{linear_ge_forward.1} parent=0 // pred_fallthru
    _
  // Predicated region
  $region6: #{linear_ge_forward.1} parent=0 // pred_check
    _
  $region7: #{linear_ge_forward.1} parent=0 // pred_check_branch
    %13 = sbr.rel (0) target = $region9
  $region8: #{linear_ge_forward.1} parent=0 // pred_region
    _
  $region9: #{linear_ge_forward.1} parent=0 // pred_fallthru
    _
  // Predicated region
  $region10: #{linear_ge_forward.1} parent=0 // pred_check
    _
  $region11: #{linear_ge_forward.1} parent=0 // pred_check_branch
    %15 = sbr.rel (0) target = $region13
  $region12: #{linear_ge_forward.1} parent=0 // pred_region
    _
  $region13: #{linear_ge_forward.1} parent=0 // pred_fallthru
    _
  // Predicated region
  $region14: #{linear_ge_forward.1} parent=0 // pred_check
    _
  $region15: #{linear_ge_forward.1} parent=0 // pred_check_branch
    %17 = sbr.rel (0) target = $region17
  $region16: #{linear_ge_forward.1} parent=0 // pred_region
    _
  $region17: #{linear_ge_forward.1} parent=0 // pred_fallthru
    _
  // Predicated region
  $region18: #{linear_ge_forward.1} parent=0 // pred_check
    _
  $region19: #{linear_ge_forward.1} parent=0 // pred_check_branch
    %19 = sbr.rel (0) target = $region21
  $region20: #{linear_ge_forward.1} parent=0 // pred_region
    _
  $region21: #{linear_ge_forward.1} parent=0 // pred_fallthru
    _
  %v21 = vld [vmem:[%s0] sm:$0xff]
  %v22 = vpack.c.bf16 %v21, %v21
  %v23 = vld [vmem:[%s1] sm:$0xf]
  %v24 = vld [vmem:[%s1 + $0x4] sm:$0xf]
  %v25 = vld [vmem:[%s1 + $0x8] sm:$0xf]
  %v26 = vld [vmem:[%s1 + $0xc] sm:$0xf]
  %v27 = vld [vmem:[%s1 + $0x10] sm:$0xf]
  %v28 = vld [vmem:[%s1 + $0x14] sm:$0xf]
  %v29 = vld [vmem:[%s1 + $0x18] sm:$0xf]
  %v30 = vld [vmem:[%s1 + $0x1c] sm:$0xf]
  %v31 = vld [vmem:[%s1 + $0x20] sm:$0xf]
  %v32 = vld [vmem:[%s1 + $0x24] sm:$0xf]
  %v33 = vld [vmem:[%s1 + $0x28] sm:$0xf]
  %v34 = vld [vmem:[%s1 + $0x2c] sm:$0xf]
  %v35 = vld [vmem:[%s1 + $0x30] sm:$0xf]
  %v36 = vld [vmem:[%s1 + $0x34] sm:$0xf]
  %v37 = vld [vmem:[%s1 + $0x38] sm:$0xf]
  %v38 = vld [vmem:[%s1 + $0x3c] sm:$0xf]
  %v39 = vld [vmem:[%s2] sm:$0x1]
  %v41 = vlaneseq
  %v42 = vshrl.u32 %v41, 7
  %v43 = vsub.s32 0, %v42
  %v44 = vrot.slane %v39, %v43
  %v62 = vunpack.c.l.b16 %v23
  %v63 = vunpack.c.l.b16 %v24
  %v64 = vunpack.c.l.b16 %v25
  %v65 = vunpack.c.l.b16 %v26
  %v66 = vunpack.c.l.b16 %v27
  %v67 = vunpack.c.l.b16 %v28
  %v68 = vunpack.c.l.b16 %v29
  %v69 = vunpack.c.l.b16 %v30
  %v70 = vunpack.c.l.b16 %v31
  %v71 = vunpack.c.l.b16 %v32
  %v72 = vunpack.c.l.b16 %v33
  %v73 = vunpack.c.l.b16 %v34
  %v74 = vunpack.c.l.b16 %v35
  %v75 = vunpack.c.l.b16 %v36
  %v76 = vunpack.c.l.b16 %v37
  %v77 = vunpack.c.l.b16 %v38
  %v78 = vpack.c.b16 %v63, %v62
  %v79 = vpack.c.b16 %v65, %v64
  %v80 = vpack.c.b16 %v67, %v66
  %v81 = vpack.c.b16 %v69, %v68
  %v82 = vpack.c.b16 %v71, %v70
  %v83 = vpack.c.b16 %v73, %v72
  %v84 = vpack.c.b16 %v75, %v74
  %v85 = vpack.c.b16 %v77, %v76
  %94 = vmatprep.subr.bf16.mxu0 0
  %95 = vmatpush1.bf16.msra.mxu0 %v85
  %96 = vmatprep.subr.bf16.mxu0 0
  %97 = vmatpush1.bf16.msra.mxu0 %v84
  %98 = vmatprep.subr.bf16.mxu0 0
  %99 = vmatpush1.bf16.msra.mxu0 %v83
  %100 = vmatprep.subr.bf16.mxu0 0
  %101 = vmatpush1.bf16.msra.mxu0 %v82
  %102 = vmatprep.subr.bf16.mxu0 0
  %103 = vmatpush1.bf16.msra.mxu0 %v81
  %104 = vmatprep.subr.bf16.mxu0 0
  %105 = vmatpush1.bf16.msra.mxu0 %v80
  %106 = vmatprep.subr.bf16.mxu0 0
  %107 = vmatpush1.bf16.msra.mxu0 %v79
  %108 = vmatprep.subr.bf16.mxu0 0
  %109 = vmatpush1.bf16.msra.mxu0 %v78
  %110 = vmatprep.subr.bf16.mxu0 0
  %111 = vmatpush2.bf16.msra.mxu0 0
  %112 = vmatprep.subr.bf16.mxu0 0
  %113 = vmatpush2.bf16.msra.mxu0 0
  %114 = vmatprep.subr.bf16.mxu0 0
  %115 = vmatpush2.bf16.msra.mxu0 0
  %116 = vmatprep.subr.bf16.mxu0 0
  %117 = vmatpush2.bf16.msra.mxu0 0
  %118 = vmatprep.subr.bf16.mxu0 0
  %119 = vmatpush2.bf16.msra.mxu0 0
  %120 = vmatprep.subr.bf16.mxu0 0
  %121 = vmatpush2.bf16.msra.mxu0 0
  %122 = vmatprep.subr.bf16.mxu0 0
  %123 = vmatpush2.bf16.msra.mxu0 0
  %124 = vmatprep.subr.bf16.mxu0 0
  %125 = vmatpush2.bf16.msra.mxu0 0
  %126 = vmatprep.mubr.bf16.mxu0 0
  %127 = vmatmul.mubr.bf16.gmra.mxu0 %v22
  %v128 = vpop.f32.mrf.mxu0
  %v129 = vadd.f32 %v44, %v128
  %v130 = vpop.f32.mrf.mxu0
  %v131 = vpop.f32.mrf.mxu0
  %v132 = vpop.f32.mrf.mxu0
  %133 = vdwg.mxu0
  %v134 = vmax.f32 %v129, 0.0
  %v135 = vpack.c.bf16 %v134, %v134
  %v136 = vld [vmem:[%s3] sm:$0xf]
  %v137 = vld [vmem:[%s3 + $0x4] sm:$0xf]
  %v138 = vld [vmem:[%s3 + $0x8] sm:$0xf]
  %v139 = vld [vmem:[%s3 + $0xc] sm:$0xf]
  %v140 = vld [vmem:[%s3 + $0x10] sm:$0xf]
  %v141 = vld [vmem:[%s3 + $0x14] sm:$0xf]
  %v142 = vld [vmem:[%s3 + $0x18] sm:$0xf]
  %v143 = vld [vmem:[%s3 + $0x1c] sm:$0xf]
  %v144 = vld [vmem:[%s3 + $0x20] sm:$0xf]
  %v145 = vld [vmem:[%s3 + $0x24] sm:$0xf]
  %v146 = vld [vmem:[%s3 + $0x28] sm:$0xf]
  %v147 = vld [vmem:[%s3 + $0x2c] sm:$0xf]
  %v148 = vld [vmem:[%s3 + $0x30] sm:$0xf]
  %v149 = vld [vmem:[%s3 + $0x34] sm:$0xf]
  %v150 = vld [vmem:[%s3 + $0x38] sm:$0xf]
  %v151 = vld [vmem:[%s3 + $0x3c] sm:$0xf]
  %v152 = vld [vmem:[%s4] sm:$0x1]
  %v154 = vlaneseq
  %v155 = vshrl.u32 %v154, 7
  %v156 = vsub.s32 0, %v155
  %v157 = vrot.slane %v152, %v156
  %v175 = vunpack.c.l.b16 %v136
  %v176 = vunpack.c.l.b16 %v137
  %v177 = vunpack.c.l.b16 %v138
  %v178 = vunpack.c.l.b16 %v139
  %v179 = vunpack.c.l.b16 %v140
  %v180 = vunpack.c.l.b16 %v141
  %v181 = vunpack.c.l.b16 %v142
  %v182 = vunpack.c.l.b16 %v143
  %v183 = vunpack.c.l.b16 %v144
  %v184 = vunpack.c.l.b16 %v145
  %v185 = vunpack.c.l.b16 %v146
  %v186 = vunpack.c.l.b16 %v147
  %v187 = vunpack.c.l.b16 %v148
  %v188 = vunpack.c.l.b16 %v149
  %v189 = vunpack.c.l.b16 %v150
  %v190 = vunpack.c.l.b16 %v151
  %v191 = vpack.c.b16 %v176, %v175
  %v192 = vpack.c.b16 %v178, %v177
  %v193 = vpack.c.b16 %v180, %v179
  %v194 = vpack.c.b16 %v182, %v181
  %v195 = vpack.c.b16 %v184, %v183
  %v196 = vpack.c.b16 %v186, %v185
  %v197 = vpack.c.b16 %v188, %v187
  %v198 = vpack.c.b16 %v190, %v189
  %207 = vmatprep.subr.bf16.mxu0 0
  %208 = vmatpush1.bf16.msra.mxu0 %v198
  %209 = vmatprep.subr.bf16.mxu0 0
  %210 = vmatpush1.bf16.msra.mxu0 %v197
  %211 = vmatprep.subr.bf16.mxu0 0
  %212 = vmatpush1.bf16.msra.mxu0 %v196
  %213 = vmatprep.subr.bf16.mxu0 0
  %214 = vmatpush1.bf16.msra.mxu0 %v195
  %215 = vmatprep.subr.bf16.mxu0 0
  %216 = vmatpush1.bf16.msra.mxu0 %v194
  %217 = vmatprep.subr.bf16.mxu0 0
  %218 = vmatpush1.bf16.msra.mxu0 %v193
  %219 = vmatprep.subr.bf16.mxu0 0
  %220 = vmatpush1.bf16.msra.mxu0 %v192
  %221 = vmatprep.subr.bf16.mxu0 0
  %222 = vmatpush1.bf16.msra.mxu0 %v191
  %223 = vmatprep.subr.bf16.mxu0 0
  %224 = vmatpush2.bf16.msra.mxu0 0
  %225 = vmatprep.subr.bf16.mxu0 0
  %226 = vmatpush2.bf16.msra.mxu0 0
  %227 = vmatprep.subr.bf16.mxu0 0
  %228 = vmatpush2.bf16.msra.mxu0 0
  %229 = vmatprep.subr.bf16.mxu0 0
  %230 = vmatpush2.bf16.msra.mxu0 0
  %231 = vmatprep.subr.bf16.mxu0 0
  %232 = vmatpush2.bf16.msra.mxu0 0
  %233 = vmatprep.subr.bf16.mxu0 0
  %234 = vmatpush2.bf16.msra.mxu0 0
  %235 = vmatprep.subr.bf16.mxu0 0
  %236 = vmatpush2.bf16.msra.mxu0 0
  %237 = vmatprep.subr.bf16.mxu0 0
  %238 = vmatpush2.bf16.msra.mxu0 0
  %239 = vmatprep.mubr.bf16.mxu0 0
  %240 = vmatmul.mubr.bf16.gmra.mxu0 %v135
  %v241 = vpop.f32.mrf.mxu0
  %v242 = vadd.f32 %v157, %v241
  %v243 = vpop.f32.mrf.mxu0
  %v244 = vpop.f32.mrf.mxu0
  %v245 = vpop.f32.mrf.mxu0
  %246 = vdwg.mxu0
  %247 = vst [vmem:[%s5] sm:$0xff] %v242
  // Predicated region
  $region22: #{linear_ge_forward.1} parent=0 // pred_check
    _
  $region23: #{linear_ge_forward.1} parent=0 // pred_check_branch
    %249 = sbr.rel (0) target = $region25
  $region24: #{linear_ge_forward.1} parent=0 // pred_region
    _
  $region25: #{linear_ge_forward.1} parent=0 // pred_fallthru
    _
  // Predicated region
  $region26: #{linear_ge_forward.1} parent=0 // pred_check
    _
  $region27: #{linear_ge_forward.1} parent=0 // pred_check_branch
    %251 = sbr.rel (0) target = $region29
  $region28: #{linear_ge_forward.1} parent=0 // pred_region
    _
  $region29: #{linear_ge_forward.1} parent=0 // pred_fallthru
    _

</llo_original>
